<compile_context>
chip_gen: v7x
topology: tpu7x:2x2x1
jax: 0.10.0
libtpu: 0.0.40
codegen_flags: <defaults>
</compile_context>

<pallas_src>
import functools

import jax
import jax.numpy as jnp
from jax.experimental import pallas as pl
from jax.experimental.pallas import tpu as pltpu

MARGIN = 0.2


# ---------------------------------------------------------------------------
# Trace-time hardware queries (with conservative fallbacks).
# ---------------------------------------------------------------------------
@functools.lru_cache(maxsize=1)
def _vmem_capacity_bytes():
    try:
        cap = int(getattr(pltpu.get_tpu_info(), "vmem_capacity_bytes", 0) or 0)
        if cap >= (16 << 20):
            return cap
    except Exception:
        pass
    return 64 << 20  # v7x-sized conservative fallback


@functools.lru_cache(maxsize=1)
def _num_tensorcores():
    # The 2-way "parallel" split only helps on chips with 2 TensorCores per JAX
    # device (v4 / v5p / v7x); on single-core v5e / v6e it would just add a
    # duplicated clamped-tile DMA, so return 1 there.
    try:
        dev = jax.devices()[0]
        if dev.platform != "tpu":
            return 1
        kind = str(getattr(dev, "device_kind", "")).lower()
        if "lite" in kind or "v5e" in kind or "v6e" in kind:
            return 1
        if "v4" in kind or "v5p" in kind or "v7" in kind:
            return 2
    except Exception:
        pass
    return 1


# ---------------------------------------------------------------------------
# Layout / tiling decisions.
# ---------------------------------------------------------------------------
def _pick_fold(batch, dim):
    """Rows folded into the lane axis so VMEM blocks are lane-dense.

    Only done when it is completely free: a row-major reshape (no copy, no
    padding), i.e. when dim divides 128 and the fold factor divides batch.
    Folds up to 512 lanes per row to keep per-sample results vreg-dense.
    """
    if dim <= 0 or dim >= 128 or 128 % dim != 0:
        return 1
    k = 128 // dim
    if batch % k != 0 or batch // k < 8:
        return 1
    while (2 * k * dim) <= 512 and batch % (2 * k) == 0 and batch // (2 * k) >= 8:
        k *= 2
    return k


def _pick_tile_rows(rows_total, lanes, in_itemsize, acc_cols, vmem_budget,
                    forced=None):
    """Largest batch tile (in folded rows) fitting the VMEM budget.

    The budget models the 3x2 double-buffered input pipeline, the f32
    in-kernel intermediates, and the accumulator / per-row temporaries.
    """
    lane_pad = pl.cdiv(lanes, 128) * 128
    col_pad = pl.cdiv(max(acc_cols, 1), 128) * 128
    per_row = (3 * 2 * lane_pad * in_itemsize   # 3 inputs x 2 pipeline buffers
               + 6 * lane_pad * 4               # f32 intermediates (a, dp, dn, squares, hi/lo)
               + 6 * col_pad * 4)               # accumulator + per-row temporaries
    if forced is not None:
        rows = min(int(forced), rows_total)
    else:
        rows = vmem_budget // per_row
        # Keep individual DMAs <= ~16 MiB so very large inputs still pipeline.
        rows = min(rows, max(8, (16 << 20) // max(lane_pad * in_itemsize, 1)))
    if rows >= rows_total:
        return rows_total, per_row              # full-extent block is always legal
    return max(8, (rows // 8) * 8), per_row


# ---------------------------------------------------------------------------
# Kernel.
# ---------------------------------------------------------------------------
def _triplet_loss_kernel(a_ref, p_ref, n_ref, o_ref, acc_ref, *,
                         margin, n_rows, fold, dim, cols, block_rows,
                         tiles_per_split):
    s = pl.program_id(0)   # partial-sum split        ("parallel")
    i = pl.program_id(1)   # batch-tile accumulation  ("arbitrary")

    @pl.when(i == 0)
    def _():
        acc_ref[...] = jnp.zeros_like(acc_ref)

    # Upcast narrow HBM dtypes to f32 inside the kernel; accumulate in f32.
    a = a_ref[...].astype(jnp.float32)
    dp = a - p_ref[...].astype(jnp.float32)
    dn = a - n_ref[...].astype(jnp.float32)
    dp2 = dp * dp
    dn2 = dn * dn

    if fold > 1:
        # Each folded row holds `fold` original rows of `dim` lanes each.
        # Segmented per-sample sums via the (idle) MXU with a 0/1 selector
        # matrix; a hi/lo split keeps ~f32 accuracy with plain bf16 matmuls.
        lanes = fold * dim
        lane = jax.lax.broadcasted_iota(jnp.int32, (lanes, cols), 0)
        grp = jax.lax.broadcasted_iota(jnp.int32, (lanes, cols), 1)
        low = grp * dim
        seg = jnp.where((lane >= low) & (lane < low + dim), 1.0, 0.0)
        seg = seg.astype(jnp.bfloat16)

        def seg_rowsum(x2):
            hi = x2.astype(jnp.bfloat16)
            lo = (x2 - hi.astype(jnp.float32)).astype(jnp.bfloat16)
            return (jnp.dot(hi, seg, preferred_element_type=jnp.float32) +
                    jnp.dot(lo, seg, preferred_element_type=jnp.float32))

        pos_sq = seg_rowsum(dp2)                        # (block_rows, cols)
        neg_sq = seg_rowsum(dn2)
    else:
        pos_sq = jnp.sum(dp2, axis=1, keepdims=True)    # (block_rows, 1)
        neg_sq = jnp.sum(dn2, axis=1, keepdims=True)

    hinge = jnp.maximum(jnp.sqrt(pos_sq) - jnp.sqrt(neg_sq) + jnp.float32(margin),
                        0.0)

    # Mask ragged last tiles, clamped (duplicated) padded grid steps, and unused
    # selector columns: all of them map to orig_row >= n_rows or g >= fold.
    # Note the mask uses the *logical* (unclamped) tile index.
    tile_idx = s * tiles_per_split + i
    r_loc = jax.lax.broadcasted_iota(jnp.int32, hinge.shape, 0)
    g_idx = jax.lax.broadcasted_iota(jnp.int32, hinge.shape, 1)
    orig_row = (tile_idx * block_rows + r_loc) * fold + g_idx
    valid = (orig_row < n_rows) & (g_idx < fold)
    acc_ref[...] += jnp.where(valid, hinge, 0.0)

    @pl.when(i == pl.num_programs(1) - 1)
    def _():
        o_ref[0, 0] = jnp.sum(acc_ref[...])             # per-split partial sum


# ---------------------------------------------------------------------------
# Wrapper.
# ---------------------------------------------------------------------------
@functools.partial(jax.jit, static_argnames=("margin", "tile_rows"))
def triplet_loss(anchor, positive, negative, margin=MARGIN, tile_rows=None):
    """Pallas TPU TripletLoss.forward: mean(relu(||a-p|| - ||a-n|| + margin))."""
    assert anchor.shape == positive.shape == negative.shape
    assert anchor.ndim == 2
    batch, dim = anchor.shape
    itemsize = jnp.dtype(anchor.dtype).itemsize

    # Lane-dense fold (free reshape, no copy, no padding).
    fold = _pick_fold(batch, dim)
    rows, lanes = batch // fold, fold * dim
    a2 = anchor.reshape(rows, lanes)
    p2 = positive.reshape(rows, lanes)
    n2 = negative.reshape(rows, lanes)

    cols = pl.cdiv(fold, 128) * 128 if fold > 1 else 1

    vmem_cap = _vmem_capacity_bytes()
    budget = int(vmem_cap * 0.55)          # headroom for compiler scratch/spills
    tile_r, per_row = _pick_tile_rows(rows, lanes, itemsize, cols, budget,
                                      tile_rows)

    num_tiles = pl.cdiv(rows, tile_r)
    nsplit = max(1, min(_num_tensorcores(), num_tiles))
    tiles_per_split = int(pl.cdiv(num_tiles, nsplit))

    def in_index_map(si, ii):
        t = si * tiles_per_split + ii
        # Clamp padded grid steps to a valid block; their rows are masked in-kernel.
        return (jnp.minimum(t, num_tiles - 1), 0)

    in_spec = pl.BlockSpec((tile_r, lanes), in_index_map)
    out_spec = pl.BlockSpec((1, 1), lambda si, ii: (si, 0),
                            memory_space=pltpu.MemorySpace.SMEM)

    kernel = functools.partial(
        _triplet_loss_kernel,
        margin=float(margin), n_rows=batch, fold=fold, dim=dim, cols=cols,
        block_rows=tile_r, tiles_per_split=tiles_per_split)

    # Explicit VMEM limit so the scoped default never bounds the tile.
    vmem_limit = int(min(vmem_cap * 0.85,
                         max(32 << 20, tile_r * per_row + (8 << 20))))

    partial_sums = pl.pallas_call(
        kernel,
        out_shape=jax.ShapeDtypeStruct((nsplit, 1), jnp.float32),
        grid=(nsplit, tiles_per_split),
        in_specs=[in_spec, in_spec, in_spec],
        out_specs=out_spec,
        scratch_shapes=[pltpu.VMEM((tile_r, cols), jnp.float32)],
        compiler_params=pltpu.CompilerParams(
            dimension_semantics=("parallel", "arbitrary"),
            vmem_limit_bytes=vmem_limit),
        cost_estimate=pl.CostEstimate(
            flops=int(10 * batch * dim),
            transcendentals=int(2 * batch),
            bytes_accessed=int(3 * batch * dim * itemsize + 4 * nsplit)),
    )(a2, p2, n2)

    return jnp.sum(partial_sums) / jnp.float32(batch)


# ---------------------------------------------------------------------------
# Self-test.
# ---------------------------------------------------------------------------
if __name__ == "__main__":
    key = jax.random.PRNGKey(0)

    def ref_loss(a, p, n, margin=MARGIN):
        a = a.astype(jnp.float32)
        p = p.astype(jnp.float32)
        n = n.astype(jnp.float32)
        pd = jnp.linalg.norm(a - p, axis=1)
        nd = jnp.linalg.norm(a - n, axis=1)
        return jnp.mean(jnp.maximum(pd - nd + margin, 0.0))

    def make(b, d, dtype, salt):
        ks = jax.random.split(jax.random.fold_in(key, salt), 3)
        return tuple(jax.random.normal(k, (b, d), dtype=jnp.float32).astype(dtype)
                     for k in ks)

    # 1) Tiny f32 batch, D < 128, no fold (single tile, single split).
    a, p, n = make(8, 32, jnp.float32, 1)
    out = triplet_loss(a, p, n)
    jax.block_until_ready(out)
    assert jnp.allclose(out, ref_loss(a, p, n), atol=1e-3, rtol=1e-3), \
        (out, ref_loss(a, p, n))

    # 2) Folded lane-dense path (D=32 -> 512-lane rows) with a forced small tile:
    #    exercises the multi-tile grid, the ragged last tile, the per-core split,
    #    and (on 2-TensorCore chips) the clamped padded grid step.
    a2_, p2_, n2_ = make(320, 32, jnp.float32, 2)
    out = triplet_loss(a2_, p2_, n2_, tile_rows=8)
    jax.block_until_ready(out)
    assert jnp.allclose(out, ref_loss(a2_, p2_, n2_), atol=1e-3, rtol=1e-3), \
        (out, ref_loss(a2_, p2_, n2_))

    # 3) Folded path with the automatic (VMEM-budget-derived) tile.
    a3_, p3_, n3_ = make(384, 32, jnp.float32, 3)
    out = triplet_loss(a3_, p3_, n3_)
    jax.block_until_ready(out)
    assert jnp.allclose(out, ref_loss(a3_, p3_, n3_), atol=1e-3, rtol=1e-3)

    # 4) bf16 inputs stay bf16 across the HBM boundary (halves bytes moved);
    #    f32 accumulation happens inside the kernel.
    a4_, p4_, n4_ = (x.astype(jnp.bfloat16) for x in (a3_, p3_, n3_))
    out = triplet_loss(a4_, p4_, n4_)
    jax.block_until_ready(out)
    assert jnp.allclose(out, ref_loss(a4_, p4_, n4_), atol=2e-2, rtol=2e-2)

    # 5) D that is not a divisor of 128 (no fold, full-extent lane block) and a
    #    natively lane-dense D = 128.
    a5_, p5_, n5_ = make(16, 48, jnp.float32, 5)
    out = triplet_loss(a5_, p5_, n5_)
    jax.block_until_ready(out)
    assert jnp.allclose(out, ref_loss(a5_, p5_, n5_), atol=1e-3, rtol=1e-3)

    a6_, p6_, n6_ = make(24, 128, jnp.float32, 6)
    out = triplet_loss(a6_, p6_, n6_)
    jax.block_until_ready(out)
    assert jnp.allclose(out, ref_loss(a6_, p6_, n6_), atol=1e-3, rtol=1e-3)

    print("KERNEL_OK")
</pallas_src>

<mosaic_0001>
module attributes {stable_mosaic.version = 11 : i64} {
  func.func @_triplet_loss_kernel(%arg0: i32, %arg1: i32, %arg2: memref<8x32xf32, #tpu.memory_space<vmem>>, %arg3: memref<8x32xf32, #tpu.memory_space<vmem>>, %arg4: memref<8x32xf32, #tpu.memory_space<vmem>>, %arg5: memref<1x1xf32, #tpu.memory_space<smem>>, %arg6: memref<8x1xf32, #tpu.memory_space<vmem>>) attributes {dimension_semantics = [#tpu.dimension_semantics<parallel>, #tpu.dimension_semantics<arbitrary>], iteration_bounds = array<i64: 1, 1>, scalar_prefetch = 0 : i64, scratch_operands = 1 : i64, tpu.core_type = #tpu.core_type<tc>, window_params = [{transform_indices = @transform_0, window_bounds = array<i64: 8, 32>}, {transform_indices = @transform_1, window_bounds = array<i64: 8, 32>}, {transform_indices = @transform_2, window_bounds = array<i64: 8, 32>}, {transform_indices = @transform_3, window_bounds = array<i64: 1, 1>}]} {
    %c0_i32 = arith.constant 0 : i32
    %0 = arith.cmpi eq, %arg1, %c0_i32 : i32
    %1 = arith.extui %0 : i1 to i32
    %c0_i32_0 = arith.constant 0 : i32
    %2 = arith.cmpi ne, %1, %c0_i32_0 : i32
    scf.if %2 {
      %cst_19 = arith.constant 0.000000e+00 : f32
      %44 = vector.broadcast %cst_19 : f32 to vector<8x1xf32>
      %c0_20 = arith.constant 0 : index
      %c0_21 = arith.constant 0 : index
      %45 = vector.load %arg6[%c0_20, %c0_21] : memref<8x1xf32, #tpu.memory_space<vmem>>, vector<8x1xf32>
      tpu.vector_store %arg6[%c0_20, %c0_21], %44 {strides = array<i32>} : memref<8x1xf32, #tpu.memory_space<vmem>>, vector<8x1xf32>,
    } else {
    }
    %c0 = arith.constant 0 : index
    %c0_1 = arith.constant 0 : index
    %3 = vector.load %arg2[%c0, %c0_1] : memref<8x32xf32, #tpu.memory_space<vmem>>, vector<8x32xf32>
    %c0_2 = arith.constant 0 : index
    %c0_3 = arith.constant 0 : index
    %4 = vector.load %arg3[%c0_2, %c0_3] : memref<8x32xf32, #tpu.memory_space<vmem>>, vector<8x32xf32>
    %5 = arith.subf %3, %4 : vector<8x32xf32>
    %c0_4 = arith.constant 0 : index
    %c0_5 = arith.constant 0 : index
    %6 = vector.load %arg4[%c0_4, %c0_5] : memref<8x32xf32, #tpu.memory_space<vmem>>, vector<8x32xf32>
    %7 = arith.subf %3, %6 : vector<8x32xf32>
    %8 = arith.mulf %5, %5 : vector<8x32xf32>
    %9 = arith.mulf %7, %7 : vector<8x32xf32>
    %cst = arith.constant dense<0.000000e+00> : vector<8xf32>
    %10 = vector.multi_reduction <add>, %8, %cst [1] : vector<8x32xf32> to vector<8xf32>
    %11 = vector.shape_cast %10 : vector<8xf32> to vector<8x1xf32>
    %cst_6 = arith.constant dense<0.000000e+00> : vector<8xf32>
    %12 = vector.multi_reduction <add>, %9, %cst_6 [1] : vector<8x32xf32> to vector<8xf32>
    %13 = vector.shape_cast %12 : vector<8xf32> to vector<8x1xf32>
    %14 = math.sqrt %11 : vector<8x1xf32>
    %15 = math.sqrt %13 : vector<8x1xf32>
    %16 = arith.subf %14, %15 : vector<8x1xf32>
    %cst_7 = arith.constant 2.000000e-01 : f32
    %17 = vector.broadcast %cst_7 : f32 to vector<8x1xf32>
    %18 = arith.addf %16, %17 : vector<8x1xf32>
    %cst_8 = arith.constant 0.000000e+00 : f32
    %19 = vector.broadcast %cst_8 : f32 to vector<8x1xf32>
    %20 = arith.maximumf %18, %19 : vector<8x1xf32>
    %c1_i32 = arith.constant 1 : i32
    %21 = arith.muli %arg0, %c1_i32 : i32
    %22 = arith.addi %21, %arg1 : i32
    %23 = tpu.iota {dimensions = array<i32: 0>} : vector<8x1xi32>
    %24 = tpu.iota {dimensions = array<i32: 1>} : vector<8x1xi32>
    %c8_i32 = arith.constant 8 : i32
    %25 = arith.muli %22, %c8_i32 : i32
    %26 = vector.broadcast %25 : i32 to vector<8x1xi32>
    %27 = arith.addi %26, %23 : vector<8x1xi32>
    %c1_i32_9 = arith.constant 1 : i32
    %28 = vector.broadcast %c1_i32_9 : i32 to vector<8x1xi32>
    %29 = arith.muli %27, %28 : vector<8x1xi32>
    %30 = arith.addi %29, %24 : vector<8x1xi32>
    %c8_i32_10 = arith.constant 8 : i32
    %31 = vector.broadcast %c8_i32_10 : i32 to vector<8x1xi32>
    %32 = arith.cmpi slt, %30, %31 : vector<8x1xi32>
    %c1_i32_11 = arith.constant 1 : i32
    %33 = vector.broadcast %c1_i32_11 : i32 to vector<8x1xi32>
    %34 = arith.cmpi slt, %24, %33 : vector<8x1xi32>
    %35 = arith.andi %32, %34 : vector<8x1xi1>
    %c0_12 = arith.constant 0 : index
    %c0_13 = arith.constant 0 : index
    %36 = vector.load %arg6[%c0_12, %c0_13] : memref<8x1xf32, #tpu.memory_space<vmem>>, vector<8x1xf32>
    %cst_14 = arith.constant 0.000000e+00 : f32
    %37 = vector.broadcast %cst_14 : f32 to vector<8x1xf32>
    %38 = arith.select %35, %20, %37 : vector<8x1xi1>, vector<8x1xf32>
    %39 = arith.addf %36, %38 : vector<8x1xf32>
    %c0_15 = arith.constant 0 : index
    %c0_16 = arith.constant 0 : index
    %40 = vector.load %arg6[%c0_15, %c0_16] : memref<8x1xf32, #tpu.memory_space<vmem>>, vector<8x1xf32>
    tpu.vector_store %arg6[%c0_15, %c0_16], %39 {strides = array<i32>} : memref<8x1xf32, #tpu.memory_space<vmem>>, vector<8x1xf32>,
    %c0_i32_17 = arith.constant 0 : i32
    %41 = arith.cmpi eq, %arg1, %c0_i32_17 : i32
    %42 = arith.extui %41 : i1 to i32
    %c0_i32_18 = arith.constant 0 : i32
    %43 = arith.cmpi ne, %42, %c0_i32_18 : i32
    scf.if %43 {
      %c0_19 = arith.constant 0 : index
      %c0_20 = arith.constant 0 : index
      %44 = vector.load %arg6[%c0_19, %c0_20] : memref<8x1xf32, #tpu.memory_space<vmem>>, vector<8x1xf32>
      %45 = vector.shape_cast %44 : vector<8x1xf32> to vector<1x8x1xf32>
      %cst_21 = arith.constant dense<0.000000e+00> : vector<1xf32>
      %46 = vector.multi_reduction <add>, %45, %cst_21 [1, 2] : vector<1x8x1xf32> to vector<1xf32>
      %47 = vector.shape_cast %46 : vector<1xf32> to vector<1x1x1xf32>
      %48 = vector.extract %47[0, 0, 0] : f32 from vector<1x1x1xf32>
      %c0_22 = arith.constant 0 : index
      %c0_23 = arith.constant 0 : index
      %49 = memref.load %arg5[%c0_22, %c0_23] : memref<1x1xf32, #tpu.memory_space<smem>>
      memref.store %48, %arg5[%c0_22, %c0_23] : memref<1x1xf32, #tpu.memory_space<smem>>
    } else {
    }
    return
  }
  func.func @transform_0(%arg0: i32, %arg1: i32) -> (i32, i32) {
    %c1_i32 = arith.constant 1 : i32
    %0 = arith.muli %arg0, %c1_i32 : i32
    %1 = arith.addi %0, %arg1 : i32
    %c0_i32 = arith.constant 0 : i32
    %2 = arith.minsi %1, %c0_i32 : i32
    %c0_i32_0 = arith.constant 0 : i32
    %c0_i32_1 = arith.constant 0 : i32
    return %2, %c0_i32_0 : i32, i32
  }
  func.func @transform_1(%arg0: i32, %arg1: i32) -> (i32, i32) {
    %c1_i32 = arith.constant 1 : i32
    %0 = arith.muli %arg0, %c1_i32 : i32
    %1 = arith.addi %0, %arg1 : i32
    %c0_i32 = arith.constant 0 : i32
    %2 = arith.minsi %1, %c0_i32 : i32
    %c0_i32_0 = arith.constant 0 : i32
    %c0_i32_1 = arith.constant 0 : i32
    return %2, %c0_i32_0 : i32, i32
  }
  func.func @transform_2(%arg0: i32, %arg1: i32) -> (i32, i32) {
    %c1_i32 = arith.constant 1 : i32
    %0 = arith.muli %arg0, %c1_i32 : i32
    %1 = arith.addi %0, %arg1 : i32
    %c0_i32 = arith.constant 0 : i32
    %2 = arith.minsi %1, %c0_i32 : i32
    %c0_i32_0 = arith.constant 0 : i32
    %c0_i32_1 = arith.constant 0 : i32
    return %2, %c0_i32_0 : i32, i32
  }
  func.func @transform_3(%arg0: i32, %arg1: i32) -> (i32, i32) {
    %c0_i32 = arith.constant 0 : i32
    %c0_i32_0 = arith.constant 0 : i32
    return %arg0, %c0_i32 : i32, i32
  }
}

</mosaic_0001>

<llo_original>
// kernel: triplet_loss.1
$region0: #{triplet_loss.1}
  #allocation0 [shape = 'u32[]', space=smem, size = 0x4, offset = 0x4, fixed_abs, tag = 'smem constant byte address 0x4 - core index']
  #allocation1 [shape = 'u32[144,128]{1,0:T(1,128)}', space=vmem, size = 0x12000, scoped, tag = 'internal scratch']
  #allocation2 [shape = 'f32[8,1]{1,0:T(8,128)}', space=vmem, size = 0x1000, scoped, tag = 'scratch operand']
  %s0 = inlined_call_operand.hbm [shape: f32[8,32], index: 0, kind: input, shape index: {}]
  %s1 = inlined_call_operand.hbm [shape: f32[8,32], index: 1, kind: input, shape index: {}]
  %s2 = inlined_call_operand.hbm [shape: f32[8,32], index: 2, kind: input, shape index: {}]
  %s3 = inlined_call_operand.hbm [shape: f32[1,1], index: 3, kind: output, shape index: {}]
  %s4 = sld [smem:[#allocation0]]
  $region42: #{triplet_loss.1} parent=0
    _
  %s6 = ssub.s32 1, %s4
  %s7 = scalar_select 0, %s6, %s4
  $region1: #{triplet_loss.1} parent=0
    #allocation3 [shape = 'u8[4096]{0}', space=vmem, size = 0x1000, scoped, tag = 'input window, operand 0, single buffered']
    #allocation4 [shape = 's32[1]{0}', space=sflag, size = 0x4, scoped, tag = 'scoped memory for triplet_loss.1']
    #allocation5 [shape = 's32[1]{0}', space=sflag, size = 0x4, scoped, tag = 'scoped memory for triplet_loss.1']
    #allocation6 [shape = 'u8[4096]{0}', space=vmem, size = 0x1000, scoped, tag = 'input window, operand 1, single buffered']
    #allocation7 [shape = 's32[1]{0}', space=sflag, size = 0x4, scoped, tag = 'scoped memory for triplet_loss.1']
    #allocation8 [shape = 'u8[4096]{0}', space=vmem, size = 0x1000, scoped, tag = 'input window, operand 2, single buffered']
    #allocation9 [shape = 'u8[512]{0}', space=smem, size = 0x200, scoped, tag = 'output window, operand 0, single buffered']
    %8 = vsyncpa [#allocation4], 0
    %9 = vsyncpa [#allocation7], 0
    %10 = vsyncpa [#allocation5], 0
    // Predicated region
    $region2: #{triplet_loss.1} parent=1 // pred_check
      _
    $region3: #{triplet_loss.1} parent=1 // pred_check_branch
      %12 = sbr.rel (0) target = $region5
    $region4: #{triplet_loss.1} parent=1 // pred_region
      %s13 = sadd.s32 0, 0
      %p14 = scmp.lt.s32.totalorder %s13, 0
      %s15 = scalar_select %p14, %s13, 0
      %s17 = ssub.s32 128, 128
      %18 = vsyncadd [#allocation4], %s17
      %s19 = smul.addr %s15, 128
      %s20 = scalar_lea.hbm %s0, %s19
      %s22 = sshll.u32 [#allocation3], 4
      %s23 = int_to_ptr.vmem [resolvable:$true] %s22
      %25 = dma.hbm_to_vmem [thread:$0]  %s20, 128, %s23, [#allocation4]
    $region5: #{triplet_loss.1} parent=1 // pred_fallthru
      _
    // Predicated region
    $region6: #{triplet_loss.1} parent=1 // pred_check
      _
    $region7: #{triplet_loss.1} parent=1 // pred_check_branch
      %27 = sbr.rel (0) target = $region9
    $region8: #{triplet_loss.1} parent=1 // pred_region
      %s28 = sadd.s32 0, 0
      %p29 = scmp.lt.s32.totalorder %s28, 0
      %s30 = scalar_select %p29, %s28, 0
      %s32 = ssub.s32 128, 128
      %33 = vsyncadd [#allocation7], %s32
      %s34 = smul.addr %s30, 128
      %s35 = scalar_lea.hbm %s1, %s34
      %s37 = sshll.u32 [#allocation6], 4
      %s38 = int_to_ptr.vmem [resolvable:$true] %s37
      %40 = dma.hbm_to_vmem [thread:$0]  %s35, 128, %s38, [#allocation7]
    $region9: #{triplet_loss.1} parent=1 // pred_fallthru
      _
    // Predicated region
    $region10: #{triplet_loss.1} parent=1 // pred_check
      _
    $region11: #{triplet_loss.1} parent=1 // pred_check_branch
      %42 = sbr.rel (0) target = $region13
    $region12: #{triplet_loss.1} parent=1 // pred_region
      %s43 = sadd.s32 0, 0
      %p44 = scmp.lt.s32.totalorder %s43, 0
      %s45 = scalar_select %p44, %s43, 0
      %s47 = ssub.s32 128, 128
      %48 = vsyncadd [#allocation7], %s47
      %s49 = smul.addr %s45, 128
      %s50 = scalar_lea.hbm %s2, %s49
      %s52 = sshll.u32 [#allocation8], 4
      %s53 = int_to_ptr.vmem [resolvable:$true] %s52
      %55 = dma.hbm_to_vmem [thread:$0]  %s50, 128, %s53, [#allocation7]
    $region13: #{triplet_loss.1} parent=1 // pred_fallthru
      _
    // Predicated region
    $region14: #{triplet_loss.1} parent=1 // pred_check
      _
    $region15: #{triplet_loss.1} parent=1 // pred_check_branch
      %57 = sbr.rel (0) target = $region17
    $region16: #{triplet_loss.1} parent=1 // pred_region
      %58 = dma.done [#allocation4], 128
    $region17: #{triplet_loss.1} parent=1 // pred_fallthru
      _
    // Predicated region
    $region18: #{triplet_loss.1} parent=1 // pred_check
      _
    $region19: #{triplet_loss.1} parent=1 // pred_check_branch
      %60 = sbr.rel (0) target = $region21
    $region20: #{triplet_loss.1} parent=1 // pred_region
      %61 = dma.done [#allocation7], 128
    $region21: #{triplet_loss.1} parent=1 // pred_fallthru
      _
    // Predicated region
    $region22: #{triplet_loss.1} parent=1 // pred_check
      _
    $region23: #{triplet_loss.1} parent=1 // pred_check_branch
      %63 = sbr.rel (0) target = $region25
    $region24: #{triplet_loss.1} parent=1 // pred_region
      %64 = dma.done [#allocation7], 128
    $region25: #{triplet_loss.1} parent=1 // pred_fallthru
      _
    %s65 = sadd.s32 0, 0
    %p66 = scmp.lt.s32.totalorder %s65, 0
    %s67 = scalar_select %p66, %s65, 0
    %s68 = sadd.s32 0, 0
    %p69 = scmp.lt.s32.totalorder %s68, 0
    %s70 = scalar_select %p69, %s68, 0
    %s71 = sadd.s32 0, 0
    %p72 = scmp.lt.s32.totalorder %s71, 0
    %s73 = scalar_select %p72, %s71, 0
    %p74 = scmp.eq.s32.totalorder 0, 0
    // Predicated region
    $region26: #{triplet_loss.1} parent=1 // pred_check
      %p75 = pneg %p74
    $region27: #{triplet_loss.1} parent=1 // pred_check_branch
      %77 = sbr.rel (%p75) target = $region29
    $region28: #{triplet_loss.1} parent=1 // pred_region
      %vm78 = vcmask 7168
      %79 = vst.msk [vmem:[#allocation2] sm:$0xff] %vm78, 0.0
    $region29: #{triplet_loss.1} parent=1 // pred_fallthru
      _
    %v80 = vld [vmem:[#allocation3] sm:$0xff]
    %v81 = vld [vmem:[#allocation6] sm:$0xff]
    %v82 = vsub.f32 %v80, %v81
    %v83 = vld [vmem:[#allocation8] sm:$0xff]
    %v84 = vsub.f32 %v80, %v83
    %v85 = vmul.f32 %v82, %v82
    %v86 = vmul.f32 %v84, %v84
    %vm87 = vcmask 261120
    %v88 = vsel %vm87, %v85, 0.0
    %89 = vadd.xlane.f32.xlu0 %v88
    %v90 = vpop.xlane.xlu0 %89
    %v91 = vsel %vm87, %v86, 0.0
    %92 = vadd.xlane.f32.xlu0 %v91
    %v93 = vpop.xlane.xlu0 %92
    %v94 = vrsqrt.pop %v90
    %v95 = vmul.f32 %v90, %v94
    %vm96 = vcmp.eq.f32.partialorder %v90, inf
    %v97 = vsel %vm96, %v90, %v95
    %vm98 = vcmp.eq.f32.partialorder %v90, 0.0
    %v99 = vand.u32 %v90, 2147483648
    %v100 = vsel %vm98, %v99, %v97
    %v101 = vrsqrt.pop %v93
    %v102 = vmul.f32 %v93, %v101
    %vm103 = vcmp.eq.f32.partialorder %v93, inf
    %v104 = vsel %vm103, %v93, %v102
    %vm105 = vcmp.eq.f32.partialorder %v93, 0.0
    %v106 = vand.u32 %v93, 2147483648
    %v107 = vsel %vm105, %v106, %v104
    %v108 = vsub.f32 %v100, %v107
    %v109 = vadd.f32 %v108, 0.2
    %v110 = vmax.f32 %v109, 0.0
    %s111 = sadd.s32 0, 0
    %v112 = vlaneseq
    %v113 = vshrl.u32 %v112, 7
    %v114 = vlaneseq
    %v115 = vand.u32 %v114, 127
    %s116 = smul.u32 %s111, 8
    %v117 = vstv %s116
    %v118 = vadd.s32 %v117, %v113
    %v119 = vadd.s32 %v118, %v115
    %vm120 = vcmp.lt.s32.totalorder %v119, 8
    %vm121 = vcmp.lt.s32.totalorder %v115, 1
    %vm122 = vmand %vm120, %vm121
    %v123 = vld [vmem:[#allocation2] sm:$0xff]
    %v124 = vsel %vm122, %v110, 0.0
    %v125 = vadd.f32 %v123, %v124
    %vm126 = vcmask 7168
    %127 = vst.msk [vmem:[#allocation2] sm:$0xff] %vm126, %v125
    // Predicated region
    $region30: #{triplet_loss.1} parent=1 // pred_check
      %p128 = pneg %p74
    $region31: #{triplet_loss.1} parent=1 // pred_check_branch
      %130 = sbr.rel (%p128) target = $region33
    $region32: #{triplet_loss.1} parent=1 // pred_region
      %v131 = vld [vmem:[#allocation2] sm:$0xff]
      %v132 = vsel %vm126, %v131, 0.0
      %133 = vadd.xlane.f32.xlu0 %v132
      %v134 = vpop.xlane.xlu0 %133
      %v135 = vrot.slane %v134, 4
      %v136 = vadd.f32 %v134, %v135
      %v137 = vrot.slane %v136, 2
      %v138 = vadd.f32 %v136, %v137
      %v139 = vrot.slane %v138, 1
      %v140 = vadd.f32 %v138, %v139
      %s141 = vtos %v140
      %s142 = scalar_lea.smem [#allocation9], 0
      %143 = sst [smem:[%s142]] %s141
    $region33: #{triplet_loss.1} parent=1 // pred_fallthru
      _
    // Predicated region
    $region34: #{triplet_loss.1} parent=1 // pred_check
      _
    $region35: #{triplet_loss.1} parent=1 // pred_check_branch
      %145 = sbr.rel (0) target = $region37
    $region36: #{triplet_loss.1} parent=1 // pred_region
      %s147 = ssub.s32 16, 16
      %148 = vsyncadd [#allocation5], %s147
      %151 = dma.smem_to_hbm [#allocation9], 16, %s3, [#allocation5]
    $region37: #{triplet_loss.1} parent=1 // pred_fallthru
      _
    // Predicated region
    $region38: #{triplet_loss.1} parent=1 // pred_check
      _
    $region39: #{triplet_loss.1} parent=1 // pred_check_branch
      %153 = sbr.rel (0) target = $region41
    $region40: #{triplet_loss.1} parent=1 // pred_region
      %154 = dma.done [#allocation5], 16
    $region41: #{triplet_loss.1} parent=1 // pred_fallthru
      _
    %155 = sfence
    %156 = vsyncpa [#allocation4], 1
    %157 = vsyncpa [#allocation7], 1
    %158 = vsyncpa [#allocation5], 1

</llo_original>
